<compile_context>
chip_gen: v6e
topology: v6e:2x2x1
jax: 0.10.0
libtpu: 0.0.40
codegen_flags: <defaults>
</compile_context>

<pallas_src>
import jax
import jax.numpy as jnp
from jax.experimental import pallas as pl
from jax.experimental.pallas import tpu as pltpu

_LANE = 128
_SUBLANE = 8
_MAX_LANES = 2048                  # lane-dense width cap (multiple of 128)
_TARGET_BLOCK_BYTES = 8 << 20      # ~8 MiB per block
_VMEM_LIMIT_BYTES = 40 << 20       # 4 x 8 MiB double-buffered in+out fits; < 64 MiB (v7x)


def _debug_kernel(x_ref, o_ref):
    # Exact op order of the PyTorch module: ((x + 5) - 3) * 3
    o_ref[...] = (x_ref[...] + 5 - 3) * 3


def _pick_tile_r(r, c, itemsize):
    """Rows per block: multiple of 8 (or full extent), ~_TARGET_BLOCK_BYTES."""
    if r <= _SUBLANE:
        return r  # block sublane dim == full array dim -> always legal
    target = max(_SUBLANE, _TARGET_BLOCK_BYTES // (c * itemsize))
    target = (target // _SUBLANE) * _SUBLANE
    r_aligned = r if r % _SUBLANE == 0 else (r // _SUBLANE) * _SUBLANE
    return min(r_aligned, target)


def _elementwise_2d(x2d, tile_r):
    r, c = x2d.shape
    n = r * c
    itemsize = jnp.dtype(x2d.dtype).itemsize
    return pl.pallas_call(
        _debug_kernel,
        out_shape=jax.ShapeDtypeStruct((r, c), x2d.dtype),
        grid=(pl.cdiv(r, tile_r),),
        in_specs=[pl.BlockSpec((tile_r, c), lambda i: (i, 0))],
        out_specs=pl.BlockSpec((tile_r, c), lambda i: (i, 0)),
        compiler_params=pltpu.CompilerParams(
            dimension_semantics=("parallel",),
            vmem_limit_bytes=_VMEM_LIMIT_BYTES),
        cost_estimate=pl.CostEstimate(
            flops=2 * n, transcendentals=0,
            bytes_accessed=2 * n * itemsize),
    )(x2d)


def _run_lane_aligned(flat, itemsize):
    """flat.size must be a multiple of 128. Returns flat result."""
    n = flat.shape[0]
    # Widen C (powers of two, multiples of 128) only while R stays >= 8 so
    # vregs remain fully packed (8 sublanes x 128 lanes).
    c = _LANE
    while c < _MAX_LANES and n % (2 * c) == 0 and n // (2 * c) >= _SUBLANE:
        c *= 2
    r = n // c
    x2d = flat.reshape(r, c)
    out = _elementwise_2d(x2d, _pick_tile_r(r, c, itemsize))
    return out.reshape(-1)


def debug_forward(x):
    """Elementwise ((x + 5) - 3) * 3 via a Pallas TPU kernel."""
    orig_shape = x.shape
    n = x.size
    itemsize = jnp.dtype(x.dtype).itemsize

    if n % _LANE == 0:
        # Fast path: no padding, no slicing — lane-dense view of the whole array.
        out = _run_lane_aligned(x.reshape(-1), itemsize)
        return out.reshape(orig_shape)

    # Ragged fallback: kernel on the 128-aligned bulk, plain-jnp tail
    # (<128 elems). Avoids the pad + post-slice HBM round-trips.
    flat = x.reshape(-1)
    bulk = (n // _LANE) * _LANE
    parts = []
    if bulk:
        parts.append(_run_lane_aligned(flat[:bulk], itemsize))
    if bulk < n:
        tail = flat[bulk:]
        parts.append((tail + 5 - 3) * 3)
    out = parts[0] if len(parts) == 1 else jnp.concatenate(parts)
    return out.reshape(orig_shape)


if __name__ == "__main__":
    key = jax.random.PRNGKey(0)
    x = jax.random.normal(key, (2, 4, 16, 16), dtype=jnp.float32)

    y = debug_forward(x)
    jax.block_until_ready(y)

    # Reference check in plain JAX
    y_ref = ((x + 5.0) - 3.0) * 3.0
    assert y.shape == x.shape
    assert y.dtype == x.dtype
    assert jnp.allclose(y, y_ref, atol=1e-6), "mismatch vs reference"

    print("KERNEL_OK")
</pallas_src>

<mosaic_0001>
module attributes {stable_mosaic.version = 11 : i64} {
  func.func @_debug_kernel(%arg0: i32, %arg1: memref<8x256xf32, #tpu.memory_space<vmem>>, %arg2: memref<8x256xf32, #tpu.memory_space<vmem>>) attributes {dimension_semantics = [#tpu.dimension_semantics<parallel>], iteration_bounds = array<i64: 1>, scalar_prefetch = 0 : i64, scratch_operands = 0 : i64, tpu.core_type = #tpu.core_type<tc>, window_params = [{transform_indices = @transform_0, window_bounds = array<i64: 8, 256>}, {transform_indices = @transform_1, window_bounds = array<i64: 8, 256>}]} {
    %c0 = arith.constant 0 : index
    %c0_0 = arith.constant 0 : index
    %0 = vector.load %arg1[%c0, %c0_0] : memref<8x256xf32, #tpu.memory_space<vmem>>, vector<8x256xf32>
    %cst = arith.constant 5.000000e+00 : f32
    %1 = vector.broadcast %cst : f32 to vector<8x256xf32>
    %2 = arith.addf %0, %1 : vector<8x256xf32>
    %cst_1 = arith.constant 3.000000e+00 : f32
    %3 = vector.broadcast %cst_1 : f32 to vector<8x256xf32>
    %4 = arith.subf %2, %3 : vector<8x256xf32>
    %cst_2 = arith.constant 3.000000e+00 : f32
    %5 = vector.broadcast %cst_2 : f32 to vector<8x256xf32>
    %6 = arith.mulf %4, %5 : vector<8x256xf32>
    %c0_3 = arith.constant 0 : index
    %c0_4 = arith.constant 0 : index
    %7 = vector.load %arg2[%c0_3, %c0_4] : memref<8x256xf32, #tpu.memory_space<vmem>>, vector<8x256xf32>
    tpu.vector_store %arg2[%c0_3, %c0_4], %6 {strides = array<i32>} : memref<8x256xf32, #tpu.memory_space<vmem>>, vector<8x256xf32>,
    return
  }
  func.func @transform_0(%arg0: i32) -> (i32, i32) {
    %c0_i32 = arith.constant 0 : i32
    %c0_i32_0 = arith.constant 0 : i32
    return %arg0, %c0_i32 : i32, i32
  }
  func.func @transform_1(%arg0: i32) -> (i32, i32) {
    %c0_i32 = arith.constant 0 : i32
    %c0_i32_0 = arith.constant 0 : i32
    return %arg0, %c0_i32 : i32, i32
  }
}

</mosaic_0001>

<llo_original>
// kernel: tpu_custom_call.1
$region0: #{tpu_custom_call.1}
  #allocation0 [shape = 'u32[]', space=smem, size = 0x4, offset = 0x4, fixed_abs, tag = 'smem constant byte address 0x4 - core index']
  #allocation1 [shape = 'u32[144,128]{1,0:T(1,128)}', space=vmem, size = 0x12000, scoped, tag = 'internal scratch']
  %s0 = inlined_call_operand.hbm [shape: f32[8,256], index: 0, kind: input, shape index: {}]
  %s1 = inlined_call_operand.hbm [shape: f32[8,256], index: 1, kind: output, shape index: {}]
  %s2 = sld [smem:[#allocation0]]
  $region18: #{tpu_custom_call.1} parent=0
    _
  %s4 = ssub.s32 1, %s2
  %s5 = scalar_select 0, %s4, %s2
  $region1: #{tpu_custom_call.1} parent=0
    #allocation2 [shape = 'u8[8192]{0}', space=vmem, size = 0x2000, scoped, tag = 'input window, operand 0, single buffered']
    #allocation3 [shape = 's32[1]{0}', space=sflag, size = 0x4, scoped, tag = 'scoped memory for tpu_custom_call.1']
    #allocation4 [shape = 's32[1]{0}', space=sflag, size = 0x4, scoped, tag = 'scoped memory for tpu_custom_call.1']
    #allocation5 [shape = 'u8[8192]{0}', space=vmem, size = 0x2000, scoped, tag = 'output window, operand 0, single buffered']
    %6 = vsyncpa [#allocation3], 0
    %7 = vsyncpa [#allocation4], 0
    // Predicated region
    $region2: #{tpu_custom_call.1} parent=1 // pred_check
      _
    $region3: #{tpu_custom_call.1} parent=1 // pred_check_branch
      %9 = sbr.rel (0) target = $region5
    $region4: #{tpu_custom_call.1} parent=1 // pred_region
      %s11 = ssub.s32 256, 256
      %12 = vsyncadd [#allocation3], %s11
      %s14 = sshll.u32 [#allocation2], 4
      %s15 = int_to_ptr.vmem [resolvable:$true] %s14
      %17 = dma.hbm_to_vmem [thread:$0]  %s0, 256, %s15, [#allocation3]
    $region5: #{tpu_custom_call.1} parent=1 // pred_fallthru
      _
    // Predicated region
    $region6: #{tpu_custom_call.1} parent=1 // pred_check
      _
    $region7: #{tpu_custom_call.1} parent=1 // pred_check_branch
      %19 = sbr.rel (0) target = $region9
    $region8: #{tpu_custom_call.1} parent=1 // pred_region
      %20 = dma.done [#allocation3], 256
    $region9: #{tpu_custom_call.1} parent=1 // pred_fallthru
      _
    %v21 = vld [vmem:[#allocation2] sm:$0xff]
    %v22 = vld [vmem:[#allocation2 + $0x8] sm:$0xff]
    %v23 = vadd.f32 %v21, 5.0
    %v24 = vadd.f32 %v22, 5.0
    %v25 = vsub.f32 %v23, 3.0
    %v26 = vsub.f32 %v24, 3.0
    %v27 = vmul.f32 %v25, 3.0
    %v28 = vmul.f32 %v26, 3.0
    %29 = vst [vmem:[#allocation5] sm:$0xff] %v27
    %30 = vst [vmem:[#allocation5 + $0x8] sm:$0xff] %v28
    // Predicated region
    $region10: #{tpu_custom_call.1} parent=1 // pred_check
      _
    $region11: #{tpu_custom_call.1} parent=1 // pred_check_branch
      %32 = sbr.rel (0) target = $region13
    $region12: #{tpu_custom_call.1} parent=1 // pred_region
      %s34 = ssub.s32 256, 256
      %35 = vsyncadd [#allocation4], %s34
      %s37 = sshll.u32 [#allocation5], 4
      %s38 = int_to_ptr.vmem [resolvable:$true] %s37
      %40 = dma.vmem_to_hbm [thread:$0]  %s38, 256, %s1, [#allocation4]
    $region13: #{tpu_custom_call.1} parent=1 // pred_fallthru
      _
    // Predicated region
    $region14: #{tpu_custom_call.1} parent=1 // pred_check
      _
    $region15: #{tpu_custom_call.1} parent=1 // pred_check_branch
      %42 = sbr.rel (0) target = $region17
    $region16: #{tpu_custom_call.1} parent=1 // pred_region
      %43 = dma.done [#allocation4], 256
    $region17: #{tpu_custom_call.1} parent=1 // pred_fallthru
      _
    %44 = vsyncpa [#allocation3], 1
    %45 = vsyncpa [#allocation4], 1

</llo_original>
